<compile_context>
chip_gen: v6e
topology: v6e:2x2x1
jax: 0.10.0
libtpu: 0.0.40
codegen_flags: <defaults>
</compile_context>

<pallas_src>
import functools

import jax
import jax.numpy as jnp
from jax.experimental import pallas as pl
from jax.experimental.pallas import tpu as pltpu

LN_EPS = 1e-5   # PyTorch nn.LayerNorm default eps
LANE = 128      # TPU vreg lane width


def _round_up(x, m):
    return ((x + m - 1) // m) * m


def _pad2(a, rows, cols):
    r, c = a.shape
    return jnp.pad(a, ((0, rows - r), (0, cols - c)))


# ---------------------------------------------------------------------------
# Fused kernel: [Linear -> ReLU -> LayerNorm] * n_hidden -> Linear -> tanh(mu + std*eps)
# ---------------------------------------------------------------------------
def make_fused_policy_kernel(n_hidden, hidden_dims):
    """Ref layout: x, (w,b,gamma,beta)*n_hidden, w_last, b_last, logstd, eps, out."""

    def kernel(*refs):
        x_ref = refs[0]
        o_ref = refs[-1]
        x = x_ref[...]
        idx = 1
        for l in range(n_hidden):
            w_ref, b_ref, g_ref, beta_ref = refs[idx:idx + 4]
            idx += 4
            inv_d = 1.0 / float(hidden_dims[l])
            y = jnp.dot(x, w_ref[...], preferred_element_type=jnp.float32)
            y = y + b_ref[...]                 # (1, 128) bias broadcasts over batch rows
            y = jnp.maximum(y, 0.0)            # activation_fn = nn.ReLU()
            # One-pass LayerNorm stats over the *logical* feature width; the zero-padded
            # lanes are exactly 0 after ReLU(0*x + 0) so they do not perturb the sums.
            s = jnp.sum(y, axis=-1, keepdims=True)
            ss = jnp.sum(y * y, axis=-1, keepdims=True)
            mean = s * inv_d
            var = ss * inv_d - mean * mean     # biased variance (PyTorch LayerNorm)
            y = (y - mean) * jax.lax.rsqrt(var + LN_EPS)
            x = y * g_ref[...] + beta_ref[...]  # padded gamma/beta are 0 -> padded lanes stay 0

        w_ref, b_ref, logstd_ref, eps_ref = refs[idx:idx + 4]
        mu = jnp.dot(x, w_ref[...], preferred_element_type=jnp.float32)
        mu = mu + b_ref[...]
        std = jnp.exp(logstd_ref[...])
        o_ref[...] = jnp.tanh(mu + std * eps_ref[...])

    return kernel


# ---------------------------------------------------------------------------
# Wrapper: pad to lane-dense shapes, tile the batch, single pallas_call
# ---------------------------------------------------------------------------
@functools.partial(jax.jit, static_argnames=("tile_b",))
def stochastic_policy_forward(obs, params, eps, *, tile_b=512):
    B, obs_dim = obs.shape
    ws, bs, gs, betas = params["w"], params["b"], params["g"], params["beta"]
    n_layers = len(ws)
    n_hidden = n_layers - 1
    hidden_dims = tuple(int(w.shape[1]) for w in ws[:-1])
    act_dim = int(ws[-1].shape[1])

    # Batch tile: sublane-aligned, capped at tile_b rows (keeps per-step VMEM tiny even on v7x).
    tb = min(int(tile_b), _round_up(B, 8))
    b_pad = _round_up(B, tb)

    obs_p = _pad2(obs, b_pad, _round_up(obs_dim, LANE))
    eps_p = _pad2(eps, b_pad, LANE)              # padded lanes are 0 -> padded outputs are tanh(0)=0

    def full_spec(shape):
        return pl.BlockSpec(shape, lambda i: (0,) * len(shape))

    operands = [obs_p]
    in_specs = [pl.BlockSpec((tb, obs_p.shape[1]), lambda i: (i, 0))]

    for l in range(n_hidden):
        wp = _pad2(ws[l], _round_up(ws[l].shape[0], LANE), LANE)
        bp = _pad2(bs[l], 1, LANE)
        gp = _pad2(gs[l], 1, LANE)
        betap = _pad2(betas[l], 1, LANE)
        for arr in (wp, bp, gp, betap):
            operands.append(arr)
            in_specs.append(full_spec(arr.shape))

    wlp = _pad2(ws[-1], _round_up(ws[-1].shape[0], LANE), LANE)
    blp = _pad2(bs[-1], 1, LANE)
    logstd_p = _pad2(params["logstd"], 1, LANE)
    for arr in (wlp, blp, logstd_p):
        operands.append(arr)
        in_specs.append(full_spec(arr.shape))

    operands.append(eps_p)
    in_specs.append(pl.BlockSpec((tb, LANE), lambda i: (i, 0)))

    # Advisory cost estimate (logical FLOPs / bytes) for XLA's scheduler.
    dims = [obs_dim] + list(hidden_dims) + [act_dim]
    flops = 2 * B * sum(a * b for a, b in zip(dims, dims[1:]))
    transcendentals = 2 * B * act_dim  # tanh + exp
    bytes_accessed = 4 * (int(obs_p.size) + int(eps_p.size) + b_pad * LANE
                          + sum(int(a.size) for a in operands[1:-1]))
    cost = pl.CostEstimate(flops=flops, transcendentals=transcendentals,
                           bytes_accessed=bytes_accessed)

    out_p = pl.pallas_call(
        make_fused_policy_kernel(n_hidden, hidden_dims),
        out_shape=jax.ShapeDtypeStruct((b_pad, LANE), jnp.float32),
        grid=(b_pad // tb,),
        in_specs=in_specs,
        out_specs=pl.BlockSpec((tb, LANE), lambda i: (i, 0)),
        compiler_params=pltpu.CompilerParams(
            dimension_semantics=("parallel",)),   # batch axis -> megacore sharding on v7x
        cost_estimate=cost,
    )(*operands)

    return out_p[:B, :act_dim]


# ---------------------------------------------------------------------------
# Parameter init (deterministic, mirrors PyTorch defaults)
# ---------------------------------------------------------------------------
def init_params(key, obs_dim, units, act_dim):
    dims = [obs_dim] + list(units) + [act_dim]
    params = {"w": [], "b": [], "g": [], "beta": []}
    for in_dim, out_dim in zip(dims, dims[1:]):
        key, kw, kb = jax.random.split(key, 3)
        bound = 1.0 / jnp.sqrt(jnp.float32(in_dim))
        # stored transposed: (in_dim, out_dim) so the kernel computes y = x @ W + b
        w = jax.random.uniform(kw, (in_dim, out_dim), jnp.float32, -bound, bound)
        b = jax.random.uniform(kb, (1, out_dim), jnp.float32, -bound, bound)
        params["w"].append(w)
        params["b"].append(b)
        params["g"].append(jnp.ones((1, out_dim), jnp.float32))      # LayerNorm gamma
        params["beta"].append(jnp.zeros((1, out_dim), jnp.float32))  # LayerNorm beta
    params["logstd"] = -1.0 * jnp.ones((1, act_dim), jnp.float32)
    return params


# ---------------------------------------------------------------------------
# Reference (plain JAX) for sanity check
# ---------------------------------------------------------------------------
def reference_forward(obs, params, eps):
    n_layers = len(params["w"])
    x = obs
    for i in range(n_layers - 1):
        y = x @ params["w"][i] + params["b"][i]
        y = jnp.maximum(y, 0.0)
        mean = jnp.mean(y, axis=-1, keepdims=True)
        var = jnp.mean((y - mean) ** 2, axis=-1, keepdims=True)
        x = (y - mean) / jnp.sqrt(var + LN_EPS) * params["g"][i] + params["beta"][i]
    mu = x @ params["w"][-1] + params["b"][-1]
    return jnp.tanh(mu + jnp.exp(params["logstd"]) * eps)


if __name__ == "__main__":
    obs_dim, act_dim = 32, 8
    units = [32, 32]
    batch = 8

    key = jax.random.PRNGKey(0)
    k_param, k_obs, k_eps = jax.random.split(key, 3)

    params = init_params(k_param, obs_dim, units, act_dim)
    obs = jax.random.normal(k_obs, (batch, obs_dim), jnp.float32)
    # reparameterization noise for Normal(mu, std).rsample()
    eps = jax.random.normal(k_eps, (batch, act_dim), jnp.float32)

    action = stochastic_policy_forward(obs, params, eps)
    action = jax.block_until_ready(action)

    ref = reference_forward(obs, params, eps)
    assert action.shape == (batch, act_dim)
    assert jnp.allclose(action, ref, atol=1e-4, rtol=1e-4)

    print("KERNEL_OK")
</pallas_src>

<mosaic_0001>
module attributes {stable_mosaic.version = 11 : i64} {
  func.func @kernel(%arg0: i32, %arg1: memref<8x128xf32, #tpu.memory_space<vmem>>, %arg2: memref<128x128xf32, #tpu.memory_space<vmem>>, %arg3: memref<1x128xf32, #tpu.memory_space<vmem>>, %arg4: memref<1x128xf32, #tpu.memory_space<vmem>>, %arg5: memref<1x128xf32, #tpu.memory_space<vmem>>, %arg6: memref<128x128xf32, #tpu.memory_space<vmem>>, %arg7: memref<1x128xf32, #tpu.memory_space<vmem>>, %arg8: memref<1x128xf32, #tpu.memory_space<vmem>>, %arg9: memref<1x128xf32, #tpu.memory_space<vmem>>, %arg10: memref<128x128xf32, #tpu.memory_space<vmem>>, %arg11: memref<1x128xf32, #tpu.memory_space<vmem>>, %arg12: memref<1x128xf32, #tpu.memory_space<vmem>>, %arg13: memref<8x128xf32, #tpu.memory_space<vmem>>, %arg14: memref<8x128xf32, #tpu.memory_space<vmem>>) attributes {dimension_semantics = [#tpu.dimension_semantics<parallel>], iteration_bounds = array<i64: 1>, scalar_prefetch = 0 : i64, scratch_operands = 0 : i64, tpu.core_type = #tpu.core_type<tc>, window_params = [{transform_indices = @transform_0, window_bounds = array<i64: 8, 128>}, {pipeline_mode = #tpu.pipeline_mode<synchronous>, transform_indices = @transform_1, window_bounds = array<i64: 128, 128>}, {pipeline_mode = #tpu.pipeline_mode<synchronous>, transform_indices = @transform_2, window_bounds = array<i64: 1, 128>}, {pipeline_mode = #tpu.pipeline_mode<synchronous>, transform_indices = @transform_3, window_bounds = array<i64: 1, 128>}, {pipeline_mode = #tpu.pipeline_mode<synchronous>, transform_indices = @transform_4, window_bounds = array<i64: 1, 128>}, {pipeline_mode = #tpu.pipeline_mode<synchronous>, transform_indices = @transform_5, window_bounds = array<i64: 128, 128>}, {pipeline_mode = #tpu.pipeline_mode<synchronous>, transform_indices = @transform_6, window_bounds = array<i64: 1, 128>}, {pipeline_mode = #tpu.pipeline_mode<synchronous>, transform_indices = @transform_7, window_bounds = array<i64: 1, 128>}, {pipeline_mode = #tpu.pipeline_mode<synchronous>, transform_indices = @transform_8, window_bounds = array<i64: 1, 128>}, {pipeline_mode = #tpu.pipeline_mode<synchronous>, transform_indices = @transform_9, window_bounds = array<i64: 128, 128>}, {pipeline_mode = #tpu.pipeline_mode<synchronous>, transform_indices = @transform_10, window_bounds = array<i64: 1, 128>}, {pipeline_mode = #tpu.pipeline_mode<synchronous>, transform_indices = @transform_11, window_bounds = array<i64: 1, 128>}, {transform_indices = @transform_12, window_bounds = array<i64: 8, 128>}, {transform_indices = @transform_13, window_bounds = array<i64: 8, 128>}]} {
    %c0 = arith.constant 0 : index
    %c0_0 = arith.constant 0 : index
    %0 = vector.load %arg1[%c0, %c0_0] : memref<8x128xf32, #tpu.memory_space<vmem>>, vector<8x128xf32>
    %c0_1 = arith.constant 0 : index
    %c0_2 = arith.constant 0 : index
    %1 = vector.load %arg2[%c0_1, %c0_2] : memref<128x128xf32, #tpu.memory_space<vmem>>, vector<128x128xf32>
    %cst = arith.constant dense<0.000000e+00> : vector<8x128xf32>
    %2 = tpu.matmul %0, %1, %cst {dimension_numbers = #tpu.dot_dimension_numbers<[1], [0], [0], [1], [0, 0, 1, 1], [], []>} : vector<8x128xf32>, vector<128x128xf32>, vector<8x128xf32> -> vector<8x128xf32>
    %c0_3 = arith.constant 0 : index
    %c0_4 = arith.constant 0 : index
    %3 = vector.load %arg3[%c0_3, %c0_4] : memref<1x128xf32, #tpu.memory_space<vmem>>, vector<1x128xf32>
    %4 = vector.broadcast %3 : vector<1x128xf32> to vector<8x128xf32>
    %5 = arith.addf %2, %4 : vector<8x128xf32>
    %cst_5 = arith.constant 0.000000e+00 : f32
    %6 = vector.broadcast %cst_5 : f32 to vector<8x128xf32>
    %7 = arith.maximumf %5, %6 : vector<8x128xf32>
    %cst_6 = arith.constant dense<0.000000e+00> : vector<8xf32>
    %8 = vector.multi_reduction <add>, %7, %cst_6 [1] : vector<8x128xf32> to vector<8xf32>
    %9 = vector.shape_cast %8 : vector<8xf32> to vector<8x1xf32>
    %10 = arith.mulf %7, %7 : vector<8x128xf32>
    %cst_7 = arith.constant dense<0.000000e+00> : vector<8xf32>
    %11 = vector.multi_reduction <add>, %10, %cst_7 [1] : vector<8x128xf32> to vector<8xf32>
    %12 = vector.shape_cast %11 : vector<8xf32> to vector<8x1xf32>
    %cst_8 = arith.constant 3.125000e-02 : f32
    %13 = vector.broadcast %cst_8 : f32 to vector<8x1xf32>
    %14 = arith.mulf %9, %13 : vector<8x1xf32>
    %cst_9 = arith.constant 3.125000e-02 : f32
    %15 = vector.broadcast %cst_9 : f32 to vector<8x1xf32>
    %16 = arith.mulf %12, %15 : vector<8x1xf32>
    %17 = arith.mulf %14, %14 : vector<8x1xf32>
    %18 = arith.subf %16, %17 : vector<8x1xf32>
    %19 = vector.broadcast %14 : vector<8x1xf32> to vector<8x128xf32>
    %20 = arith.subf %7, %19 : vector<8x128xf32>
    %cst_10 = arith.constant 9.99999974E-6 : f32
    %21 = vector.broadcast %cst_10 : f32 to vector<8x1xf32>
    %22 = arith.addf %18, %21 : vector<8x1xf32>
    %23 = math.rsqrt %22 : vector<8x1xf32>
    %24 = vector.broadcast %23 : vector<8x1xf32> to vector<8x128xf32>
    %25 = arith.mulf %20, %24 : vector<8x128xf32>
    %c0_11 = arith.constant 0 : index
    %c0_12 = arith.constant 0 : index
    %26 = vector.load %arg4[%c0_11, %c0_12] : memref<1x128xf32, #tpu.memory_space<vmem>>, vector<1x128xf32>
    %27 = vector.broadcast %26 : vector<1x128xf32> to vector<8x128xf32>
    %28 = arith.mulf %25, %27 : vector<8x128xf32>
    %c0_13 = arith.constant 0 : index
    %c0_14 = arith.constant 0 : index
    %29 = vector.load %arg5[%c0_13, %c0_14] : memref<1x128xf32, #tpu.memory_space<vmem>>, vector<1x128xf32>
    %30 = vector.broadcast %29 : vector<1x128xf32> to vector<8x128xf32>
    %31 = arith.addf %28, %30 : vector<8x128xf32>
    %c0_15 = arith.constant 0 : index
    %c0_16 = arith.constant 0 : index
    %32 = vector.load %arg6[%c0_15, %c0_16] : memref<128x128xf32, #tpu.memory_space<vmem>>, vector<128x128xf32>
    %cst_17 = arith.constant dense<0.000000e+00> : vector<8x128xf32>
    %33 = tpu.matmul %31, %32, %cst_17 {dimension_numbers = #tpu.dot_dimension_numbers<[1], [0], [0], [1], [0, 0, 1, 1], [], []>} : vector<8x128xf32>, vector<128x128xf32>, vector<8x128xf32> -> vector<8x128xf32>
    %c0_18 = arith.constant 0 : index
    %c0_19 = arith.constant 0 : index
    %34 = vector.load %arg7[%c0_18, %c0_19] : memref<1x128xf32, #tpu.memory_space<vmem>>, vector<1x128xf32>
    %35 = vector.broadcast %34 : vector<1x128xf32> to vector<8x128xf32>
    %36 = arith.addf %33, %35 : vector<8x128xf32>
    %cst_20 = arith.constant 0.000000e+00 : f32
    %37 = vector.broadcast %cst_20 : f32 to vector<8x128xf32>
    %38 = arith.maximumf %36, %37 : vector<8x128xf32>
    %cst_21 = arith.constant dense<0.000000e+00> : vector<8xf32>
    %39 = vector.multi_reduction <add>, %38, %cst_21 [1] : vector<8x128xf32> to vector<8xf32>
    %40 = vector.shape_cast %39 : vector<8xf32> to vector<8x1xf32>
    %41 = arith.mulf %38, %38 : vector<8x128xf32>
    %cst_22 = arith.constant dense<0.000000e+00> : vector<8xf32>
    %42 = vector.multi_reduction <add>, %41, %cst_22 [1] : vector<8x128xf32> to vector<8xf32>
    %43 = vector.shape_cast %42 : vector<8xf32> to vector<8x1xf32>
    %cst_23 = arith.constant 3.125000e-02 : f32
    %44 = vector.broadcast %cst_23 : f32 to vector<8x1xf32>
    %45 = arith.mulf %40, %44 : vector<8x1xf32>
    %cst_24 = arith.constant 3.125000e-02 : f32
    %46 = vector.broadcast %cst_24 : f32 to vector<8x1xf32>
    %47 = arith.mulf %43, %46 : vector<8x1xf32>
    %48 = arith.mulf %45, %45 : vector<8x1xf32>
    %49 = arith.subf %47, %48 : vector<8x1xf32>
    %50 = vector.broadcast %45 : vector<8x1xf32> to vector<8x128xf32>
    %51 = arith.subf %38, %50 : vector<8x128xf32>
    %cst_25 = arith.constant 9.99999974E-6 : f32
    %52 = vector.broadcast %cst_25 : f32 to vector<8x1xf32>
    %53 = arith.addf %49, %52 : vector<8x1xf32>
    %54 = math.rsqrt %53 : vector<8x1xf32>
    %55 = vector.broadcast %54 : vector<8x1xf32> to vector<8x128xf32>
    %56 = arith.mulf %51, %55 : vector<8x128xf32>
    %c0_26 = arith.constant 0 : index
    %c0_27 = arith.constant 0 : index
    %57 = vector.load %arg8[%c0_26, %c0_27] : memref<1x128xf32, #tpu.memory_space<vmem>>, vector<1x128xf32>
    %58 = vector.broadcast %57 : vector<1x128xf32> to vector<8x128xf32>
    %59 = arith.mulf %56, %58 : vector<8x128xf32>
    %c0_28 = arith.constant 0 : index
    %c0_29 = arith.constant 0 : index
    %60 = vector.load %arg9[%c0_28, %c0_29] : memref<1x128xf32, #tpu.memory_space<vmem>>, vector<1x128xf32>
    %61 = vector.broadcast %60 : vector<1x128xf32> to vector<8x128xf32>
    %62 = arith.addf %59, %61 : vector<8x128xf32>
    %c0_30 = arith.constant 0 : index
    %c0_31 = arith.constant 0 : index
    %63 = vector.load %arg10[%c0_30, %c0_31] : memref<128x128xf32, #tpu.memory_space<vmem>>, vector<128x128xf32>
    %cst_32 = arith.constant dense<0.000000e+00> : vector<8x128xf32>
    %64 = tpu.matmul %62, %63, %cst_32 {dimension_numbers = #tpu.dot_dimension_numbers<[1], [0], [0], [1], [0, 0, 1, 1], [], []>} : vector<8x128xf32>, vector<128x128xf32>, vector<8x128xf32> -> vector<8x128xf32>
    %c0_33 = arith.constant 0 : index
    %c0_34 = arith.constant 0 : index
    %65 = vector.load %arg11[%c0_33, %c0_34] : memref<1x128xf32, #tpu.memory_space<vmem>>, vector<1x128xf32>
    %66 = vector.broadcast %65 : vector<1x128xf32> to vector<8x128xf32>
    %67 = arith.addf %64, %66 : vector<8x128xf32>
    %c0_35 = arith.constant 0 : index
    %c0_36 = arith.constant 0 : index
    %68 = vector.load %arg12[%c0_35, %c0_36] : memref<1x128xf32, #tpu.memory_space<vmem>>, vector<1x128xf32>
    %69 = math.exp %68 : vector<1x128xf32>
    %c0_37 = arith.constant 0 : index
    %c0_38 = arith.constant 0 : index
    %70 = vector.load %arg13[%c0_37, %c0_38] : memref<8x128xf32, #tpu.memory_space<vmem>>, vector<8x128xf32>
    %71 = vector.broadcast %69 : vector<1x128xf32> to vector<8x128xf32>
    %72 = arith.mulf %71, %70 : vector<8x128xf32>
    %73 = arith.addf %67, %72 : vector<8x128xf32>
    %74 = math.tanh %73 : vector<8x128xf32>
    %c0_39 = arith.constant 0 : index
    %c0_40 = arith.constant 0 : index
    %75 = vector.load %arg14[%c0_39, %c0_40] : memref<8x128xf32, #tpu.memory_space<vmem>>, vector<8x128xf32>
    tpu.vector_store %arg14[%c0_39, %c0_40], %74 {strides = array<i32>} : memref<8x128xf32, #tpu.memory_space<vmem>>, vector<8x128xf32>,
    return
  }
  func.func @transform_0(%arg0: i32) -> (i32, i32) {
    %c0_i32 = arith.constant 0 : i32
    %c0_i32_0 = arith.constant 0 : i32
    return %arg0, %c0_i32 : i32, i32
  }
  func.func @transform_1(%arg0: i32) -> (i32, i32) {
    %c0_i32 = arith.constant 0 : i32
    %c0_i32_0 = arith.constant 0 : i32
    %c0_i32_1 = arith.constant 0 : i32
    return %c0_i32, %c0_i32_0 : i32, i32
  }
  func.func @transform_2(%arg0: i32) -> (i32, i32) {
    %c0_i32 = arith.constant 0 : i32
    %c0_i32_0 = arith.constant 0 : i32
    %c0_i32_1 = arith.constant 0 : i32
    return %c0_i32, %c0_i32_0 : i32, i32
  }
  func.func @transform_3(%arg0: i32) -> (i32, i32) {
    %c0_i32 = arith.constant 0 : i32
    %c0_i32_0 = arith.constant 0 : i32
    %c0_i32_1 = arith.constant 0 : i32
    return %c0_i32, %c0_i32_0 : i32, i32
  }
  func.func @transform_4(%arg0: i32) -> (i32, i32) {
    %c0_i32 = arith.constant 0 : i32
    %c0_i32_0 = arith.constant 0 : i32
    %c0_i32_1 = arith.constant 0 : i32
    return %c0_i32, %c0_i32_0 : i32, i32
  }
  func.func @transform_5(%arg0: i32) -> (i32, i32) {
    %c0_i32 = arith.constant 0 : i32
    %c0_i32_0 = arith.constant 0 : i32
    %c0_i32_1 = arith.constant 0 : i32
    return %c0_i32, %c0_i32_0 : i32, i32
  }
  func.func @transform_6(%arg0: i32) -> (i32, i32) {
    %c0_i32 = arith.constant 0 : i32
    %c0_i32_0 = arith.constant 0 : i32
    %c0_i32_1 = arith.constant 0 : i32
    return %c0_i32, %c0_i32_0 : i32, i32
  }
  func.func @transform_7(%arg0: i32) -> (i32, i32) {
    %c0_i32 = arith.constant 0 : i32
    %c0_i32_0 = arith.constant 0 : i32
    %c0_i32_1 = arith.constant 0 : i32
    return %c0_i32, %c0_i32_0 : i32, i32
  }
  func.func @transform_8(%arg0: i32) -> (i32, i32) {
    %c0_i32 = arith.constant 0 : i32
    %c0_i32_0 = arith.constant 0 : i32
    %c0_i32_1 = arith.constant 0 : i32
    return %c0_i32, %c0_i32_0 : i32, i32
  }
  func.func @transform_9(%arg0: i32) -> (i32, i32) {
    %c0_i32 = arith.constant 0 : i32
    %c0_i32_0 = arith.constant 0 : i32
    %c0_i32_1 = arith.constant 0 : i32
    return %c0_i32, %c0_i32_0 : i32, i32
  }
  func.func @transform_10(%arg0: i32) -> (i32, i32) {
    %c0_i32 = arith.constant 0 : i32
    %c0_i32_0 = arith.constant 0 : i32
    %c0_i32_1 = arith.constant 0 : i32
    return %c0_i32, %c0_i32_0 : i32, i32
  }
  func.func @transform_11(%arg0: i32) -> (i32, i32) {
    %c0_i32 = arith.constant 0 : i32
    %c0_i32_0 = arith.constant 0 : i32
    %c0_i32_1 = arith.constant 0 : i32
    return %c0_i32, %c0_i32_0 : i32, i32
  }
  func.func @transform_12(%arg0: i32) -> (i32, i32) {
    %c0_i32 = arith.constant 0 : i32
    %c0_i32_0 = arith.constant 0 : i32
    return %arg0, %c0_i32 : i32, i32
  }
  func.func @transform_13(%arg0: i32) -> (i32, i32) {
    %c0_i32 = arith.constant 0 : i32
    %c0_i32_0 = arith.constant 0 : i32
    return %arg0, %c0_i32 : i32, i32
  }
}

</mosaic_0001>

<llo_original>
// kernel: stochastic_policy_forward.1
$region0: #{stochastic_policy_forward.1}
  #allocation0 [shape = 'u32[]', space=smem, size = 0x4, offset = 0x4, fixed_abs, tag = 'smem constant byte address 0x4 - core index']
  #allocation1 [shape = 'u32[144,128]{1,0:T(1,128)}', space=vmem, size = 0x12000, scoped, tag = 'internal scratch']
  %s0 = inlined_call_operand.vmem [shape: f32[8,128], index: 0, kind: input, shape index: {}]
  %s1 = inlined_call_operand.vmem [shape: f32[128,128], index: 1, kind: input, shape index: {}]
  %s2 = inlined_call_operand.vmem [shape: f32[1,128], index: 2, kind: input, shape index: {}]
  %s3 = inlined_call_operand.vmem [shape: f32[1,128], index: 3, kind: input, shape index: {}]
  %s4 = inlined_call_operand.vmem [shape: f32[1,128], index: 4, kind: input, shape index: {}]
  %s5 = inlined_call_operand.vmem [shape: f32[128,128], index: 5, kind: input, shape index: {}]
  %s6 = inlined_call_operand.vmem [shape: f32[1,128], index: 6, kind: input, shape index: {}]
  %s7 = inlined_call_operand.vmem [shape: f32[1,128], index: 7, kind: input, shape index: {}]
  %s8 = inlined_call_operand.vmem [shape: f32[1,128], index: 8, kind: input, shape index: {}]
  %s9 = inlined_call_operand.vmem [shape: f32[128,128], index: 9, kind: input, shape index: {}]
  %s10 = inlined_call_operand.vmem [shape: f32[1,128], index: 10, kind: input, shape index: {}]
  %s11 = inlined_call_operand.vmem [shape: f32[1,128], index: 11, kind: input, shape index: {}]
  %s12 = inlined_call_operand.vmem [shape: f32[8,128], index: 12, kind: input, shape index: {}]
  %s13 = inlined_call_operand.hbm [shape: f32[8,128], index: 13, kind: output, shape index: {}]
  %s14 = sld [smem:[#allocation0]]
  $region62: #{stochastic_policy_forward.1} parent=0
    _
  %s16 = ssub.s32 1, %s14
  %s17 = scalar_select 0, %s16, %s14
  $region1: #{stochastic_policy_forward.1} parent=0
    #allocation2 [shape = 'u8[4096]{0}', space=vmem, size = 0x1000, scoped, tag = 'output window, operand 0, single buffered']
    #allocation3 [shape = 's32[1]{0}', space=sflag, size = 0x4, scoped, tag = 'scoped memory for stochastic_policy_forward.1']
    %18 = vsyncpa [#allocation3], 0
    // Predicated region
    $region2: #{stochastic_policy_forward.1} parent=1 // pred_check
      _
    $region3: #{stochastic_policy_forward.1} parent=1 // pred_check_branch
      %20 = sbr.rel (0) target = $region5
    $region4: #{stochastic_policy_forward.1} parent=1 // pred_region
      _
    $region5: #{stochastic_policy_forward.1} parent=1 // pred_fallthru
      _
    // Predicated region
    $region6: #{stochastic_policy_forward.1} parent=1 // pred_check
      _
    $region7: #{stochastic_policy_forward.1} parent=1 // pred_check_branch
      %22 = sbr.rel (0) target = $region9
    $region8: #{stochastic_policy_forward.1} parent=1 // pred_region
      _
    $region9: #{stochastic_policy_forward.1} parent=1 // pred_fallthru
      _
    // Predicated region
    $region10: #{stochastic_policy_forward.1} parent=1 // pred_check
      _
    $region11: #{stochastic_policy_forward.1} parent=1 // pred_check_branch
      %24 = sbr.rel (0) target = $region13
    $region12: #{stochastic_policy_forward.1} parent=1 // pred_region
      _
    $region13: #{stochastic_policy_forward.1} parent=1 // pred_fallthru
      _
    // Predicated region
    $region14: #{stochastic_policy_forward.1} parent=1 // pred_check
      _
    $region15: #{stochastic_policy_forward.1} parent=1 // pred_check_branch
      %26 = sbr.rel (0) target = $region17
    $region16: #{stochastic_policy_forward.1} parent=1 // pred_region
      _
    $region17: #{stochastic_policy_forward.1} parent=1 // pred_fallthru
      _
    // Predicated region
    $region18: #{stochastic_policy_forward.1} parent=1 // pred_check
      _
    $region19: #{stochastic_policy_forward.1} parent=1 // pred_check_branch
      %28 = sbr.rel (0) target = $region21
    $region20: #{stochastic_policy_forward.1} parent=1 // pred_region
      _
    $region21: #{stochastic_policy_forward.1} parent=1 // pred_fallthru
      _
    // Predicated region
    $region22: #{stochastic_policy_forward.1} parent=1 // pred_check
      _
    $region23: #{stochastic_policy_forward.1} parent=1 // pred_check_branch
      %30 = sbr.rel (0) target = $region25
    $region24: #{stochastic_policy_forward.1} parent=1 // pred_region
      _
    $region25: #{stochastic_policy_forward.1} parent=1 // pred_fallthru
      _
    // Predicated region
    $region26: #{stochastic_policy_forward.1} parent=1 // pred_check
      _
    $region27: #{stochastic_policy_forward.1} parent=1 // pred_check_branch
      %32 = sbr.rel (0) target = $region29
    $region28: #{stochastic_policy_forward.1} parent=1 // pred_region
      _
    $region29: #{stochastic_policy_forward.1} parent=1 // pred_fallthru
      _
    // Predicated region
    $region30: #{stochastic_policy_forward.1} parent=1 // pred_check
      _
    $region31: #{stochastic_policy_forward.1} parent=1 // pred_check_branch
      %34 = sbr.rel (0) target = $region33
    $region32: #{stochastic_policy_forward.1} parent=1 // pred_region
      _
    $region33: #{stochastic_policy_forward.1} parent=1 // pred_fallthru
      _
    // Predicated region
    $region34: #{stochastic_policy_forward.1} parent=1 // pred_check
      _
    $region35: #{stochastic_policy_forward.1} parent=1 // pred_check_branch
      %36 = sbr.rel (0) target = $region37
    $region36: #{stochastic_policy_forward.1} parent=1 // pred_region
      _
    $region37: #{stochastic_policy_forward.1} parent=1 // pred_fallthru
      _
    // Predicated region
    $region38: #{stochastic_policy_forward.1} parent=1 // pred_check
      _
    $region39: #{stochastic_policy_forward.1} parent=1 // pred_check_branch
      %38 = sbr.rel (0) target = $region41
    $region40: #{stochastic_policy_forward.1} parent=1 // pred_region
      _
    $region41: #{stochastic_policy_forward.1} parent=1 // pred_fallthru
      _
    // Predicated region
    $region42: #{stochastic_policy_forward.1} parent=1 // pred_check
      _
    $region43: #{stochastic_policy_forward.1} parent=1 // pred_check_branch
      %40 = sbr.rel (0) target = $region45
    $region44: #{stochastic_policy_forward.1} parent=1 // pred_region
      _
    $region45: #{stochastic_policy_forward.1} parent=1 // pred_fallthru
      _
    // Predicated region
    $region46: #{stochastic_policy_forward.1} parent=1 // pred_check
      _
    $region47: #{stochastic_policy_forward.1} parent=1 // pred_check_branch
      %42 = sbr.rel (0) target = $region49
    $region48: #{stochastic_policy_forward.1} parent=1 // pred_region
      _
    $region49: #{stochastic_policy_forward.1} parent=1 // pred_fallthru
      _
    // Predicated region
    $region50: #{stochastic_policy_forward.1} parent=1 // pred_check
      _
    $region51: #{stochastic_policy_forward.1} parent=1 // pred_check_branch
      %44 = sbr.rel (0) target = $region53
    $region52: #{stochastic_policy_forward.1} parent=1 // pred_region
      _
    $region53: #{stochastic_policy_forward.1} parent=1 // pred_fallthru
      _
    %v45 = vld [vmem:[%s0] sm:$0xff]
    %v46 = vld [vmem:[%s1] sm:$0xff]
    %v47 = vld [vmem:[%s1 + $0x8] sm:$0xff]
    %v48 = vld [vmem:[%s1 + $0x10] sm:$0xff]
    %v49 = vld [vmem:[%s1 + $0x18] sm:$0xff]
    %v50 = vld [vmem:[%s1 + $0x20] sm:$0xff]
    %v51 = vld [vmem:[%s1 + $0x28] sm:$0xff]
    %v52 = vld [vmem:[%s1 + $0x30] sm:$0xff]
    %v53 = vld [vmem:[%s1 + $0x38] sm:$0xff]
    %v54 = vld [vmem:[%s1 + $0x40] sm:$0xff]
    %v55 = vld [vmem:[%s1 + $0x48] sm:$0xff]
    %v56 = vld [vmem:[%s1 + $0x50] sm:$0xff]
    %v57 = vld [vmem:[%s1 + $0x58] sm:$0xff]
    %v58 = vld [vmem:[%s1 + $0x60] sm:$0xff]
    %v59 = vld [vmem:[%s1 + $0x68] sm:$0xff]
    %v60 = vld [vmem:[%s1 + $0x70] sm:$0xff]
    %v61 = vld [vmem:[%s1 + $0x78] sm:$0xff]
    %v62 = vld [vmem:[%s2] sm:$0x1]
    %v64 = vlaneseq
    %v65 = vshrl.u32 %v64, 7
    %v66 = vsub.s32 0, %v65
    %v67 = vrot.slane %v62, %v66
    %69 = vmatprep.subr.mxu0 0.0
    %70 = vmatpush1.msra.mxu0 %v61
    %71 = vmatprep.subr.mxu0 0.0
    %72 = vmatpush1.msra.mxu0 %v60
    %73 = vmatprep.subr.mxu0 0.0
    %74 = vmatpush1.msra.mxu0 %v59
    %75 = vmatprep.subr.mxu0 0.0
    %76 = vmatpush1.msra.mxu0 %v58
    %77 = vmatprep.subr.mxu0 0.0
    %78 = vmatpush1.msra.mxu0 %v57
    %79 = vmatprep.subr.mxu0 0.0
    %80 = vmatpush1.msra.mxu0 %v56
    %81 = vmatprep.subr.mxu0 0.0
    %82 = vmatpush1.msra.mxu0 %v55
    %83 = vmatprep.subr.mxu0 0.0
    %84 = vmatpush1.msra.mxu0 %v54
    %85 = vmatprep.subr.mxu0 0.0
    %86 = vmatpush1.msra.mxu0 %v53
    %87 = vmatprep.subr.mxu0 0.0
    %88 = vmatpush1.msra.mxu0 %v52
    %89 = vmatprep.subr.mxu0 0.0
    %90 = vmatpush1.msra.mxu0 %v51
    %91 = vmatprep.subr.mxu0 0.0
    %92 = vmatpush1.msra.mxu0 %v50
    %93 = vmatprep.subr.mxu0 0.0
    %94 = vmatpush1.msra.mxu0 %v49
    %95 = vmatprep.subr.mxu0 0.0
    %96 = vmatpush1.msra.mxu0 %v48
    %97 = vmatprep.subr.mxu0 0.0
    %98 = vmatpush1.msra.mxu0 %v47
    %99 = vmatprep.subr.mxu0 0.0
    %100 = vmatpush1.msra.mxu0 %v46
    %101 = vmatprep.subr.mxu0 0.0
    %102 = vmatpush2.msra.mxu0 0.0
    %103 = vmatprep.subr.mxu0 0.0
    %104 = vmatpush2.msra.mxu0 0.0
    %105 = vmatprep.subr.mxu0 0.0
    %106 = vmatpush2.msra.mxu0 0.0
    %107 = vmatprep.subr.mxu0 0.0
    %108 = vmatpush2.msra.mxu0 0.0
    %109 = vmatprep.subr.mxu0 0.0
    %110 = vmatpush2.msra.mxu0 0.0
    %111 = vmatprep.subr.mxu0 0.0
    %112 = vmatpush2.msra.mxu0 0.0
    %113 = vmatprep.subr.mxu0 0.0
    %114 = vmatpush2.msra.mxu0 0.0
    %115 = vmatprep.subr.mxu0 0.0
    %116 = vmatpush2.msra.mxu0 0.0
    %117 = vmatprep.subr.mxu0 0.0
    %118 = vmatpush2.msra.mxu0 0.0
    %119 = vmatprep.subr.mxu0 0.0
    %120 = vmatpush2.msra.mxu0 0.0
    %121 = vmatprep.subr.mxu0 0.0
    %122 = vmatpush2.msra.mxu0 0.0
    %123 = vmatprep.subr.mxu0 0.0
    %124 = vmatpush2.msra.mxu0 0.0
    %125 = vmatprep.subr.mxu0 0.0
    %126 = vmatpush2.msra.mxu0 0.0
    %127 = vmatprep.subr.mxu0 0.0
    %128 = vmatpush2.msra.mxu0 0.0
    %129 = vmatprep.subr.mxu0 0.0
    %130 = vmatpush2.msra.mxu0 0.0
    %131 = vmatprep.subr.mxu0 0.0
    %132 = vmatpush2.msra.mxu0 0.0
    %133 = vmatprep.mubr.f32.mxu0 0.0
    %134 = vmatmul.mubr.f32.gmra.mxu0 %v45
    %v135 = vpop.f32.mrf.mxu0
    %v136 = vadd.f32 %v67, %v135
    %v137 = vpop.f32.mrf.mxu0
    %138 = vdwg.mxu0
    %v139 = vmax.f32 %v136, 0.0
    %140 = vadd.xlane.f32.xlu0 %v139
    %v141 = vpop.xlane.xlu0 %140
    %v142 = vmul.f32 %v139, %v139
    %143 = vadd.xlane.f32.xlu0 %v142
    %v144 = vpop.xlane.xlu0 %143
    %v145 = vmul.f32 %v141, 0.03125
    %v146 = vmul.f32 %v144, 0.03125
    %v147 = vmul.f32 %v145, %v145
    %v148 = vsub.f32 %v146, %v147
    %v149 = vsub.f32 %v139, %v145
    %v150 = vadd.f32 %v148, 1e-05
    %v151 = vrsqrt.pop %v150
    %v152 = vmul.f32 %v149, %v151
    %v153 = vld [vmem:[%s3] sm:$0x1]
    %v155 = vlaneseq
    %v156 = vshrl.u32 %v155, 7
    %v157 = vsub.s32 0, %v156
    %v158 = vrot.slane %v153, %v157
    %v160 = vmul.f32 %v152, %v158
    %v161 = vld [vmem:[%s4] sm:$0x1]
    %v163 = vlaneseq
    %v164 = vshrl.u32 %v163, 7
    %v165 = vsub.s32 0, %v164
    %v166 = vrot.slane %v161, %v165
    %v168 = vadd.f32 %v160, %v166
    %v169 = vld [vmem:[%s5] sm:$0xff]
    %v170 = vld [vmem:[%s5 + $0x8] sm:$0xff]
    %v171 = vld [vmem:[%s5 + $0x10] sm:$0xff]
    %v172 = vld [vmem:[%s5 + $0x18] sm:$0xff]
    %v173 = vld [vmem:[%s5 + $0x20] sm:$0xff]
    %v174 = vld [vmem:[%s5 + $0x28] sm:$0xff]
    %v175 = vld [vmem:[%s5 + $0x30] sm:$0xff]
    %v176 = vld [vmem:[%s5 + $0x38] sm:$0xff]
    %v177 = vld [vmem:[%s5 + $0x40] sm:$0xff]
    %v178 = vld [vmem:[%s5 + $0x48] sm:$0xff]
    %v179 = vld [vmem:[%s5 + $0x50] sm:$0xff]
    %v180 = vld [vmem:[%s5 + $0x58] sm:$0xff]
    %v181 = vld [vmem:[%s5 + $0x60] sm:$0xff]
    %v182 = vld [vmem:[%s5 + $0x68] sm:$0xff]
    %v183 = vld [vmem:[%s5 + $0x70] sm:$0xff]
    %v184 = vld [vmem:[%s5 + $0x78] sm:$0xff]
    %v185 = vld [vmem:[%s6] sm:$0x1]
    %v187 = vlaneseq
    %v188 = vshrl.u32 %v187, 7
    %v189 = vsub.s32 0, %v188
    %v190 = vrot.slane %v185, %v189
    %192 = vmatprep.subr.mxu0 0.0
    %193 = vmatpush1.msra.mxu0 %v184
    %194 = vmatprep.subr.mxu0 0.0
    %195 = vmatpush1.msra.mxu0 %v183
    %196 = vmatprep.subr.mxu0 0.0
    %197 = vmatpush1.msra.mxu0 %v182
    %198 = vmatprep.subr.mxu0 0.0
    %199 = vmatpush1.msra.mxu0 %v181
    %200 = vmatprep.subr.mxu0 0.0
    %201 = vmatpush1.msra.mxu0 %v180
    %202 = vmatprep.subr.mxu0 0.0
    %203 = vmatpush1.msra.mxu0 %v179
    %204 = vmatprep.subr.mxu0 0.0
    %205 = vmatpush1.msra.mxu0 %v178
    %206 = vmatprep.subr.mxu0 0.0
    %207 = vmatpush1.msra.mxu0 %v177
    %208 = vmatprep.subr.mxu0 0.0
    %209 = vmatpush1.msra.mxu0 %v176
    %210 = vmatprep.subr.mxu0 0.0
    %211 = vmatpush1.msra.mxu0 %v175
    %212 = vmatprep.subr.mxu0 0.0
    %213 = vmatpush1.msra.mxu0 %v174
    %214 = vmatprep.subr.mxu0 0.0
    %215 = vmatpush1.msra.mxu0 %v173
    %216 = vmatprep.subr.mxu0 0.0
    %217 = vmatpush1.msra.mxu0 %v172
    %218 = vmatprep.subr.mxu0 0.0
    %219 = vmatpush1.msra.mxu0 %v171
    %220 = vmatprep.subr.mxu0 0.0
    %221 = vmatpush1.msra.mxu0 %v170
    %222 = vmatprep.subr.mxu0 0.0
    %223 = vmatpush1.msra.mxu0 %v169
    %224 = vmatprep.subr.mxu0 0.0
    %225 = vmatpush2.msra.mxu0 0.0
    %226 = vmatprep.subr.mxu0 0.0
    %227 = vmatpush2.msra.mxu0 0.0
    %228 = vmatprep.subr.mxu0 0.0
    %229 = vmatpush2.msra.mxu0 0.0
    %230 = vmatprep.subr.mxu0 0.0
    %231 = vmatpush2.msra.mxu0 0.0
    %232 = vmatprep.subr.mxu0 0.0
    %233 = vmatpush2.msra.mxu0 0.0
    %234 = vmatprep.subr.mxu0 0.0
    %235 = vmatpush2.msra.mxu0 0.0
    %236 = vmatprep.subr.mxu0 0.0
    %237 = vmatpush2.msra.mxu0 0.0
    %238 = vmatprep.subr.mxu0 0.0
    %239 = vmatpush2.msra.mxu0 0.0
    %240 = vmatprep.subr.mxu0 0.0
    %241 = vmatpush2.msra.mxu0 0.0
    %242 = vmatprep.subr.mxu0 0.0
    %243 = vmatpush2.msra.mxu0 0.0
    %244 = vmatprep.subr.mxu0 0.0
    %245 = vmatpush2.msra.mxu0 0.0
    %246 = vmatprep.subr.mxu0 0.0
    %247 = vmatpush2.msra.mxu0 0.0
    %248 = vmatprep.subr.mxu0 0.0
    %249 = vmatpush2.msra.mxu0 0.0
    %250 = vmatprep.subr.mxu0 0.0
    %251 = vmatpush2.msra.mxu0 0.0
    %252 = vmatprep.subr.mxu0 0.0
    %253 = vmatpush2.msra.mxu0 0.0
    %254 = vmatprep.subr.mxu0 0.0
    %255 = vmatpush2.msra.mxu0 0.0
    %256 = vmatprep.mubr.f32.mxu0 0.0
    %257 = vmatmul.mubr.f32.gmra.mxu0 %v168
    %v258 = vpop.f32.mrf.mxu0
    %v259 = vadd.f32 %v190, %v258
    %v260 = vpop.f32.mrf.mxu0
    %261 = vdwg.mxu0
    %v262 = vmax.f32 %v259, 0.0
    %263 = vadd.xlane.f32.xlu0 %v262
    %v264 = vpop.xlane.xlu0 %263
    %v265 = vmul.f32 %v262, %v262
    %266 = vadd.xlane.f32.xlu0 %v265
    %v267 = vpop.xlane.xlu0 %266
    %v268 = vmul.f32 %v264, 0.03125
    %v269 = vmul.f32 %v267, 0.03125
    %v270 = vmul.f32 %v268, %v268
    %v271 = vsub.f32 %v269, %v270
    %v272 = vsub.f32 %v262, %v268
    %v273 = vadd.f32 %v271, 1e-05
    %v274 = vrsqrt.pop %v273
    %v275 = vmul.f32 %v272, %v274
    %v276 = vld [vmem:[%s7] sm:$0x1]
    %v278 = vlaneseq
    %v279 = vshrl.u32 %v278, 7
    %v280 = vsub.s32 0, %v279
    %v281 = vrot.slane %v276, %v280
    %v283 = vmul.f32 %v275, %v281
    %v284 = vld [vmem:[%s8] sm:$0x1]
    %v286 = vlaneseq
    %v287 = vshrl.u32 %v286, 7
    %v288 = vsub.s32 0, %v287
    %v289 = vrot.slane %v284, %v288
    %v291 = vadd.f32 %v283, %v289
    %v292 = vld [vmem:[%s9] sm:$0xff]
    %v293 = vld [vmem:[%s9 + $0x8] sm:$0xff]
    %v294 = vld [vmem:[%s9 + $0x10] sm:$0xff]
    %v295 = vld [vmem:[%s9 + $0x18] sm:$0xff]
    %v296 = vld [vmem:[%s9 + $0x20] sm:$0xff]
    %v297 = vld [vmem:[%s9 + $0x28] sm:$0xff]
    %v298 = vld [vmem:[%s9 + $0x30] sm:$0xff]
    %v299 = vld [vmem:[%s9 + $0x38] sm:$0xff]
    %v300 = vld [vmem:[%s9 + $0x40] sm:$0xff]
    %v301 = vld [vmem:[%s9 + $0x48] sm:$0xff]
    %v302 = vld [vmem:[%s9 + $0x50] sm:$0xff]
    %v303 = vld [vmem:[%s9 + $0x58] sm:$0xff]
    %v304 = vld [vmem:[%s9 + $0x60] sm:$0xff]
    %v305 = vld [vmem:[%s9 + $0x68] sm:$0xff]
    %v306 = vld [vmem:[%s9 + $0x70] sm:$0xff]
    %v307 = vld [vmem:[%s9 + $0x78] sm:$0xff]
    %v308 = vld [vmem:[%s10] sm:$0x1]
    %v310 = vlaneseq
    %v311 = vshrl.u32 %v310, 7
    %v312 = vsub.s32 0, %v311
    %v313 = vrot.slane %v308, %v312
    %315 = vmatprep.subr.mxu0 0.0
    %316 = vmatpush1.msra.mxu0 %v307
    %317 = vmatprep.subr.mxu0 0.0
    %318 = vmatpush1.msra.mxu0 %v306
    %319 = vmatprep.subr.mxu0 0.0
    %320 = vmatpush1.msra.mxu0 %v305
    %321 = vmatprep.subr.mxu0 0.0
    %322 = vmatpush1.msra.mxu0 %v304
    %323 = vmatprep.subr.mxu0 0.0
    %324 = vmatpush1.msra.mxu0 %v303
    %325 = vmatprep.subr.mxu0 0.0
    %326 = vmatpush1.msra.mxu0 %v302
    %327 = vmatprep.subr.mxu0 0.0
    %328 = vmatpush1.msra.mxu0 %v301
    %329 = vmatprep.subr.mxu0 0.0
    %330 = vmatpush1.msra.mxu0 %v300
    %331 = vmatprep.subr.mxu0 0.0
    %332 = vmatpush1.msra.mxu0 %v299
    %333 = vmatprep.subr.mxu0 0.0
    %334 = vmatpush1.msra.mxu0 %v298
    %335 = vmatprep.subr.mxu0 0.0
    %336 = vmatpush1.msra.mxu0 %v297
    %337 = vmatprep.subr.mxu0 0.0
    %338 = vmatpush1.msra.mxu0 %v296
    %339 = vmatprep.subr.mxu0 0.0
    %340 = vmatpush1.msra.mxu0 %v295
    %341 = vmatprep.subr.mxu0 0.0
    %342 = vmatpush1.msra.mxu0 %v294
    %343 = vmatprep.subr.mxu0 0.0
    %344 = vmatpush1.msra.mxu0 %v293
    %345 = vmatprep.subr.mxu0 0.0
    %346 = vmatpush1.msra.mxu0 %v292
    %347 = vmatprep.subr.mxu0 0.0
    %348 = vmatpush2.msra.mxu0 0.0
    %349 = vmatprep.subr.mxu0 0.0
    %350 = vmatpush2.msra.mxu0 0.0
    %351 = vmatprep.subr.mxu0 0.0
    %352 = vmatpush2.msra.mxu0 0.0
    %353 = vmatprep.subr.mxu0 0.0
    %354 = vmatpush2.msra.mxu0 0.0
    %355 = vmatprep.subr.mxu0 0.0
    %356 = vmatpush2.msra.mxu0 0.0
    %357 = vmatprep.subr.mxu0 0.0
    %358 = vmatpush2.msra.mxu0 0.0
    %359 = vmatprep.subr.mxu0 0.0
    %360 = vmatpush2.msra.mxu0 0.0
    %361 = vmatprep.subr.mxu0 0.0
    %362 = vmatpush2.msra.mxu0 0.0
    %363 = vmatprep.subr.mxu0 0.0
    %364 = vmatpush2.msra.mxu0 0.0
    %365 = vmatprep.subr.mxu0 0.0
    %366 = vmatpush2.msra.mxu0 0.0
    %367 = vmatprep.subr.mxu0 0.0
    %368 = vmatpush2.msra.mxu0 0.0
    %369 = vmatprep.subr.mxu0 0.0
    %370 = vmatpush2.msra.mxu0 0.0
    %371 = vmatprep.subr.mxu0 0.0
    %372 = vmatpush2.msra.mxu0 0.0
    %373 = vmatprep.subr.mxu0 0.0
    %374 = vmatpush2.msra.mxu0 0.0
    %375 = vmatprep.subr.mxu0 0.0
    %376 = vmatpush2.msra.mxu0 0.0
    %377 = vmatprep.subr.mxu0 0.0
    %378 = vmatpush2.msra.mxu0 0.0
    %379 = vmatprep.mubr.f32.mxu0 0.0
    %380 = vmatmul.mubr.f32.gmra.mxu0 %v291
    %v381 = vpop.f32.mrf.mxu0
    %v382 = vadd.f32 %v313, %v381
    %v383 = vpop.f32.mrf.mxu0
    %384 = vdwg.mxu0
    %v385 = vld [vmem:[%s11] sm:$0x1]
    %v386 = vmul.f32 %v385, 1.442695
    %v387 = vpow.pop %v386
    %v388 = vld [vmem:[%s12] sm:$0xff]
    %v390 = vlaneseq
    %v391 = vshrl.u32 %v390, 7
    %v392 = vsub.s32 0, %v391
    %v393 = vrot.slane %v387, %v392
    %v395 = vmul.f32 %v393, %v388
    %v396 = vadd.f32 %v382, %v395
    %v397 = vtanh.pop %v396
    %398 = vst [vmem:[#allocation2] sm:$0xff] %v397
    // Predicated region
    $region54: #{stochastic_policy_forward.1} parent=1 // pred_check
      _
    $region55: #{stochastic_policy_forward.1} parent=1 // pred_check_branch
      %400 = sbr.rel (0) target = $region57
    $region56: #{stochastic_policy_forward.1} parent=1 // pred_region
      %s402 = ssub.s32 128, 128
      %403 = vsyncadd [#allocation3], %s402
      %s405 = sshll.u32 [#allocation2], 4
      %s406 = int_to_ptr.vmem [resolvable:$true] %s405
      %408 = dma.vmem_to_hbm [thread:$0]  %s406, 128, %s13, [#allocation3]
    $region57: #{stochastic_policy_forward.1} parent=1 // pred_fallthru
      _
    // Predicated region
    $region58: #{stochastic_policy_forward.1} parent=1 // pred_check
      _
    $region59: #{stochastic_policy_forward.1} parent=1 // pred_check_branch
      %410 = sbr.rel (0) target = $region61
    $region60: #{stochastic_policy_forward.1} parent=1 // pred_region
      %411 = dma.done [#allocation3], 128
    $region61: #{stochastic_policy_forward.1} parent=1 // pred_fallthru
      _
    %412 = vsyncpa [#allocation3], 1

</llo_original>
